<compile_context>
chip_gen: v7x
topology: tpu7x:2x2x1
jax: 0.10.0
libtpu: 0.0.40
codegen_flags: <defaults>
</compile_context>

<pallas_src>
import functools

import jax
import jax.numpy as jnp
from jax.experimental import pallas as pl
from jax.experimental.pallas import tpu as pltpu

GAMMA_INIT = 0.5
BN_EPS = 1e-5
# bf16 matmul operands (f32 accumulation) for the QK^T and PV matmuls.
# Keeps softmax (max/exp/sum), normalization and residual in f32.
USE_BF16_MATMUL = True


def _self_attention_kernel(x_ref, w_ref, b_ref, gamma_ref, o_ref,
                           *, c, qk_pad, use_bf16):
    """One batch element per grid step.

    x_ref     : (1, C, N) VMEM   input tokens, channels on sublanes
    w_ref     : (R, C)    VMEM   fused folded projection weights
    b_ref     : (R, 1)    VMEM   fused folded projection bias (+ ones row)
    gamma_ref : (1,)      SMEM   residual scale
    o_ref     : (1, C, N) VMEM   output
    Row layout of the fused projection (R = round_up(2*qk_pad + C + 1, 8)):
      [0, qk_pad)              q  (scale 1/Cq folded in; zero-padded rows)
      [qk_pad, 2*qk_pad)       k  (zero-padded rows)
      [2*qk_pad, 2*qk_pad+C)   v
      2*qk_pad + C             constant ones row (weights 0, bias 1)
    """
    x = x_ref[0]                                                     # (C, N)

    # Single fused projection matmul on the MXU: (R, C) @ (C, N) + (R, 1).
    proj = jnp.dot(w_ref[...], x,
                   preferred_element_type=jnp.float32) + b_ref[...]  # (R, N)

    q = proj[0:qk_pad]                                               # (8, N)
    k = proj[qk_pad:2 * qk_pad]                                      # (8, N)
    v_aug = proj[2 * qk_pad:2 * qk_pad + c + 1]                      # (C+1, N)

    mm_dtype = jnp.bfloat16 if use_bf16 else jnp.float32

    # logits[i, j] = sum_c q[c, i] * k[c, j]   (contract the channel/sublane
    # dim directly; no materialized transpose).  Zero-padded q/k rows add 0.
    logits = jax.lax.dot_general(
        q.astype(mm_dtype), k.astype(mm_dtype),
        dimension_numbers=(((0,), (0,)), ((), ())),
        preferred_element_type=jnp.float32)                          # (N, N)

    # Numerically-stable softmax over j; normalization deferred past PV.
    logits = logits - jnp.max(logits, axis=-1, keepdims=True)
    e = jnp.exp(logits)                                              # (N, N) f32

    # out_aug[r, i] = sum_j v_aug[r, j] * e[i, j]; the appended ones row of
    # v_aug makes out_aug[C, i] == rowsum_i (softmax denominator), already in
    # lane layout.
    out_aug = jax.lax.dot_general(
        v_aug.astype(mm_dtype), e.astype(mm_dtype),
        dimension_numbers=(((1,), (1,)), ((), ())),
        preferred_element_type=jnp.float32)                          # (C+1, N)

    inv_denom = pl.reciprocal(out_aug[c:c + 1], approx=True)         # (1, N)
    out = out_aug[0:c] * inv_denom                                   # (C, N)

    gamma = gamma_ref[0]
    o_ref[0] = gamma * out + x


def self_attention_pallas(x_nchw, params):
    """x_nchw: (B, C, H, W) float32.  Returns (B, C, H, W) float32."""
    B, C, H, W = x_nchw.shape
    N = H * W
    qk_pad = params["qk_pad"]
    R = params["w_all"].shape[0]

    # NCHW -> (B, C, N): a pure reshape, no data movement.
    x_tok = x_nchw.reshape(B, C, N)

    kernel = functools.partial(
        _self_attention_kernel, c=C, qk_pad=qk_pad, use_bf16=USE_BF16_MATMUL)

    out_tok = pl.pallas_call(
        kernel,
        out_shape=jax.ShapeDtypeStruct((B, C, N), jnp.float32),
        grid_spec=pltpu.PrefetchScalarGridSpec(
            num_scalar_prefetch=0,
            grid=(B,),                                    # one batch / step
            in_specs=[
                pl.BlockSpec((1, C, N), lambda b: (b, 0, 0)),   # x (B, C, N)
                pl.BlockSpec((R, C), lambda b: (0, 0)),         # fused weights
                pl.BlockSpec((R, 1), lambda b: (0, 0)),         # fused bias
                pl.BlockSpec(memory_space=pltpu.MemorySpace.SMEM),  # gamma
            ],
            out_specs=pl.BlockSpec((1, C, N), lambda b: (b, 0, 0)),
        ),
        compiler_params=pltpu.CompilerParams(
            dimension_semantics=("parallel",)),
    )(x_tok, params["w_all"], params["b_all"], params["gamma"])

    # (B, C, N) -> NCHW: free reshape.
    return out_tok.reshape(B, C, H, W)


def _fold_conv_bn(conv_w_oc_ic, bn_w, bn_b, bn_mean, bn_var):
    """Fold eval-mode BatchNorm into a bias-free 1x1 conv.

    Returns (w_eff (out_c, in_c), b_eff (out_c,)) for 'W @ x + b' with x in
    (C, N) layout.
    """
    scale = bn_w / jnp.sqrt(bn_var + BN_EPS)                  # (out_c,)
    w_eff = conv_w_oc_ic * scale[:, None]                     # (out_c, in_c)
    b_eff = bn_b - bn_mean * scale                            # (out_c,)
    return w_eff.astype(jnp.float32), b_eff.astype(jnp.float32)


def make_params(key, in_channels):
    C = in_channels
    Cq = C // 8
    ks = jax.random.split(key, 16)

    def conv_bn_params(k0, k1, k2, k3, k4, out_c):
        conv_w = 0.1 * jax.random.normal(k0, (out_c, C), jnp.float32)
        bn_w = 1.0 + 0.1 * jax.random.normal(k1, (out_c,), jnp.float32)
        bn_b = 0.05 * jax.random.normal(k2, (out_c,), jnp.float32)
        bn_mean = 0.1 * jax.random.normal(k3, (out_c,), jnp.float32)
        bn_var = 0.5 + jax.random.uniform(k4, (out_c,), jnp.float32)
        return conv_w, bn_w, bn_b, bn_mean, bn_var

    q_raw = conv_bn_params(ks[0], ks[1], ks[2], ks[3], ks[4], Cq)
    k_raw = conv_bn_params(ks[5], ks[6], ks[7], ks[8], ks[9], Cq)
    v_raw = conv_bn_params(ks[10], ks[11], ks[12], ks[13], ks[14], C)

    wq, bq = _fold_conv_bn(*q_raw)
    wk, bk = _fold_conv_bn(*k_raw)
    wv, bv = _fold_conv_bn(*v_raw)

    # Attention scale: Cq^-0.5 on q AND on k == 1/Cq on logits, folded into q.
    wq = wq / Cq
    bq = bq / Cq

    # Pack everything into one fused projection matrix.
    qk_pad = max(8, -(-Cq // 8) * 8)          # sublane-aligned q/k row blocks
    r_total = 2 * qk_pad + C + 1              # + constant-ones row for rowsums
    r_pad = -(-r_total // 8) * 8

    w_all = jnp.zeros((r_pad, C), jnp.float32)
    b_all = jnp.zeros((r_pad,), jnp.float32)
    w_all = (w_all
             .at[0:Cq].set(wq)
             .at[qk_pad:qk_pad + Cq].set(wk)
             .at[2 * qk_pad:2 * qk_pad + C].set(wv))
    b_all = (b_all
             .at[0:Cq].set(bq)
             .at[qk_pad:qk_pad + Cq].set(bk)
             .at[2 * qk_pad:2 * qk_pad + C].set(bv)
             .at[2 * qk_pad + C].set(1.0))    # ones row -> softmax denominators

    params = {
        "w_all": w_all,
        "b_all": b_all.reshape(r_pad, 1),
        "gamma": jnp.full((1,), GAMMA_INIT, jnp.float32),
        "qk_pad": qk_pad,
        # raw params for the pure-JAX reference
        "_raw": {"q": q_raw, "k": k_raw, "v": v_raw},
    }
    return params


def reference_forward(x, params):
    """Pure-JAX reference mirroring the PyTorch op order (eval-mode BN)."""
    B, C, H, W = x.shape
    N = H * W
    raw = params["_raw"]
    Cq = raw["q"][0].shape[0]

    def conv_bn(x, r):
        conv_w, bn_w, bn_b, bn_mean, bn_var = r
        y = jnp.einsum("bchw,oc->bohw", x, conv_w)
        scale = (bn_w / jnp.sqrt(bn_var + BN_EPS))[None, :, None, None]
        return (y - bn_mean[None, :, None, None]) * scale + bn_b[None, :, None, None]

    q = conv_bn(x, raw["q"]).reshape(B, Cq, N)
    k = conv_bn(x, raw["k"]).reshape(B, Cq, N)
    v = conv_bn(x, raw["v"]).reshape(B, C, N)

    q = jnp.transpose(q, (0, 2, 1))                    # (B, N, Cq)
    q = (Cq ** -0.5) * q
    k = (Cq ** -0.5) * k
    attn_map = jnp.einsum("bnc,bcm->bnm", q, k)        # (B, N, N)
    attn = jax.nn.softmax(attn_map, axis=-1)
    out = jnp.einsum("bcn,bmn->bcm", v, attn)          # (B, C, N)
    out = out.reshape(B, C, H, W)
    return params["gamma"][0] * out + x


if __name__ == "__main__":
    B, C, H, W = 2, 32, 16, 16   # C // 8 = 4, N = 256

    key = jax.random.PRNGKey(0)
    kx, kp = jax.random.split(key)
    x = jax.random.normal(kx, (B, C, H, W), jnp.float32)
    params = make_params(kp, C)

    out = jax.block_until_ready(self_attention_pallas(x, params))
    ref = jax.block_until_ready(reference_forward(x, params))

    err = float(jnp.max(jnp.abs(out - ref)))
    tol = 5e-2 if USE_BF16_MATMUL else 1e-3   # bf16 matmul operands, f32 accum
    assert out.shape == (B, C, H, W)
    assert err < tol, f"mismatch vs reference: {err}"

    print("KERNEL_OK")
</pallas_src>

<mosaic_0001>
module attributes {stable_mosaic.version = 11 : i64} {
  func.func @_self_attention_kernel(%arg0: i32, %arg1: memref<1x32x256xf32, #tpu.memory_space<vmem>>, %arg2: memref<56x32xf32, #tpu.memory_space<vmem>>, %arg3: memref<56x1xf32, #tpu.memory_space<vmem>>, %arg4: memref<1xf32, #tpu.memory_space<smem>>, %arg5: memref<1x32x256xf32, #tpu.memory_space<vmem>>) attributes {dimension_semantics = [#tpu.dimension_semantics<parallel>], iteration_bounds = array<i64: 2>, scalar_prefetch = 0 : i64, scratch_operands = 0 : i64, tpu.core_type = #tpu.core_type<tc>, window_params = [{transform_indices = @transform_0, window_bounds = array<i64: 1, 32, 256>}, {pipeline_mode = #tpu.pipeline_mode<synchronous>, transform_indices = @transform_1, window_bounds = array<i64: 56, 32>}, {pipeline_mode = #tpu.pipeline_mode<synchronous>, transform_indices = @transform_2, window_bounds = array<i64: 56, 1>}, {transform_indices = @transform_3, window_bounds = array<i64: 1>}, {transform_indices = @transform_4, window_bounds = array<i64: 1, 32, 256>}]} {
    %c0 = arith.constant 0 : index
    %c0_0 = arith.constant 0 : index
    %c0_1 = arith.constant 0 : index
    %0 = vector.load %arg1[%c0, %c0_0, %c0_1] : memref<1x32x256xf32, #tpu.memory_space<vmem>>, vector<1x32x256xf32>
    %1 = vector.shape_cast %0 : vector<1x32x256xf32> to vector<32x256xf32>
    %c0_2 = arith.constant 0 : index
    %c0_3 = arith.constant 0 : index
    %2 = vector.load %arg2[%c0_2, %c0_3] : memref<56x32xf32, #tpu.memory_space<vmem>>, vector<56x32xf32>
    %cst = arith.constant dense<0.000000e+00> : vector<56x256xf32>
    %3 = tpu.matmul %2, %1, %cst {dimension_numbers = #tpu.dot_dimension_numbers<[1], [0], [0], [1], [0, 0, 1, 1], [], []>} : vector<56x32xf32>, vector<32x256xf32>, vector<56x256xf32> -> vector<56x256xf32>
    %c0_4 = arith.constant 0 : index
    %c0_5 = arith.constant 0 : index
    %4 = vector.load %arg3[%c0_4, %c0_5] : memref<56x1xf32, #tpu.memory_space<vmem>>, vector<56x1xf32>
    %5 = vector.broadcast %4 : vector<56x1xf32> to vector<56x256xf32>
    %6 = arith.addf %3, %5 : vector<56x256xf32>
    %7 = vector.extract_strided_slice %6 {offsets = [0, 0], sizes = [8, 256], strides = [1, 1]} : vector<56x256xf32> to vector<8x256xf32>
    %8 = vector.extract_strided_slice %6 {offsets = [8, 0], sizes = [8, 256], strides = [1, 1]} : vector<56x256xf32> to vector<8x256xf32>
    %9 = vector.extract_strided_slice %6 {offsets = [16, 0], sizes = [33, 256], strides = [1, 1]} : vector<56x256xf32> to vector<33x256xf32>
    %10 = arith.truncf %7 : vector<8x256xf32> to vector<8x256xbf16>
    %11 = arith.truncf %8 : vector<8x256xf32> to vector<8x256xbf16>
    %cst_6 = arith.constant dense<0.000000e+00> : vector<256x256xf32>
    %12 = tpu.matmul %10, %11, %cst_6 {dimension_numbers = #tpu.dot_dimension_numbers<[0], [0], [1], [1], [0, 1, 1, 1], [], []>} : vector<8x256xbf16>, vector<8x256xbf16>, vector<256x256xf32> -> vector<256x256xf32>
    %cst_7 = arith.constant dense<0xFF800000> : vector<256xf32>
    %13 = vector.multi_reduction <maximumf>, %12, %cst_7 [1] : vector<256x256xf32> to vector<256xf32>
    %14 = vector.shape_cast %13 : vector<256xf32> to vector<256x1xf32>
    %15 = vector.broadcast %14 : vector<256x1xf32> to vector<256x256xf32>
    %16 = arith.subf %12, %15 : vector<256x256xf32>
    %17 = math.exp %16 : vector<256x256xf32>
    %18 = arith.truncf %9 : vector<33x256xf32> to vector<33x256xbf16>
    %19 = arith.truncf %17 : vector<256x256xf32> to vector<256x256xbf16>
    %cst_8 = arith.constant dense<0.000000e+00> : vector<33x256xf32>
    %20 = tpu.matmul %18, %19, %cst_8 {dimension_numbers = #tpu.dot_dimension_numbers<[1], [1], [0], [0], [0, 0, 1, 0], [], []>} : vector<33x256xbf16>, vector<256x256xbf16>, vector<33x256xf32> -> vector<33x256xf32>
    %21 = vector.extract_strided_slice %20 {offsets = [32, 0], sizes = [1, 256], strides = [1, 1]} : vector<33x256xf32> to vector<1x256xf32>
    %22 = tpu.reciprocal %21 {approx = true} : vector<1x256xf32> -> vector<1x256xf32>
    %23 = vector.extract_strided_slice %20 {offsets = [0, 0], sizes = [32, 256], strides = [1, 1]} : vector<33x256xf32> to vector<32x256xf32>
    %24 = vector.broadcast %22 : vector<1x256xf32> to vector<32x256xf32>
    %25 = arith.mulf %23, %24 : vector<32x256xf32>
    %c0_9 = arith.constant 0 : index
    %26 = memref.load %arg4[%c0_9] : memref<1xf32, #tpu.memory_space<smem>>
    %27 = vector.broadcast %26 : f32 to vector<32x256xf32>
    %28 = arith.mulf %27, %25 : vector<32x256xf32>
    %29 = arith.addf %28, %1 : vector<32x256xf32>
    %c0_10 = arith.constant 0 : index
    %c0_11 = arith.constant 0 : index
    %c0_12 = arith.constant 0 : index
    %30 = vector.load %arg5[%c0_10, %c0_11, %c0_12] : memref<1x32x256xf32, #tpu.memory_space<vmem>>, vector<1x32x256xf32>
    %31 = vector.shape_cast %30 : vector<1x32x256xf32> to vector<32x256xf32>
    %32 = vector.shape_cast %29 : vector<32x256xf32> to vector<1x32x256xf32>
    tpu.vector_store %arg5[%c0_10, %c0_11, %c0_12], %32 {strides = array<i32>} : memref<1x32x256xf32, #tpu.memory_space<vmem>>, vector<1x32x256xf32>,
    return
  }
  func.func @transform_0(%arg0: i32) -> (i32, i32, i32) {
    %c0_i32 = arith.constant 0 : i32
    %c0_i32_0 = arith.constant 0 : i32
    %c0_i32_1 = arith.constant 0 : i32
    return %arg0, %c0_i32, %c0_i32_0 : i32, i32, i32
  }
  func.func @transform_1(%arg0: i32) -> (i32, i32) {
    %c0_i32 = arith.constant 0 : i32
    %c0_i32_0 = arith.constant 0 : i32
    %c0_i32_1 = arith.constant 0 : i32
    return %c0_i32, %c0_i32_0 : i32, i32
  }
  func.func @transform_2(%arg0: i32) -> (i32, i32) {
    %c0_i32 = arith.constant 0 : i32
    %c0_i32_0 = arith.constant 0 : i32
    %c0_i32_1 = arith.constant 0 : i32
    return %c0_i32, %c0_i32_0 : i32, i32
  }
  func.func @transform_3(%arg0: i32) -> i32 {
    %c0_i32 = arith.constant 0 : i32
    %c0_i32_0 = arith.constant 0 : i32
    return %c0_i32 : i32
  }
  func.func @transform_4(%arg0: i32) -> (i32, i32, i32) {
    %c0_i32 = arith.constant 0 : i32
    %c0_i32_0 = arith.constant 0 : i32
    %c0_i32_1 = arith.constant 0 : i32
    return %arg0, %c0_i32, %c0_i32_0 : i32, i32, i32
  }
}

</mosaic_0001>

<llo_original>
// kernel: tpu_custom_call.1
$region0: #{tpu_custom_call.1}
  #allocation0 [shape = 'u32[]', space=smem, size = 0x4, offset = 0x4, fixed_abs, tag = 'smem constant byte address 0x4 - core index']
  #allocation1 [shape = 'u32[144,128]{1,0:T(1,128)}', space=vmem, size = 0x12000, scoped, tag = 'internal scratch']
  #allocation2 [shape = 'f32[1]{0:T(128)S(6)}', space=smem, size = 0x200, scoped, tag = 'scoped memory for tpu_custom_call.1']
  %s0 = inlined_call_operand.vmem [shape: f32[2,32,256], index: 0, kind: input, shape index: {}]
  %s1 = inlined_call_operand.vmem [shape: f32[56,32], index: 1, kind: input, shape index: {}]
  %s2 = inlined_call_operand.vmem [shape: f32[56,1], index: 2, kind: input, shape index: {}]
  %s3 = inlined_call_operand.<no memory space> [shape: f32[1], index: 3, kind: input, shape index: {}]
  %s4 = inlined_call_operand.hbm [shape: f32[2,32,256], index: 4, kind: output, shape index: {}]
  %s5 = sld [smem:[#allocation0]]
  $region49: #{tpu_custom_call.1} parent=0
    _
  %s7 = ssub.s32 1, %s5
  %s8 = scalar_select 0, %s7, %s5
  %9 = sst [smem:[#allocation2]] %s3
  $region1: #{tpu_custom_call.1} parent=0
    #allocation3 [shape = 'u8[65536]{0}', space=vmem, size = 0x10000, scoped, tag = 'output window, operand 0']
    #allocation4 [shape = 's32[2]{0}', space=sflag, size = 0x8, scoped, tag = 'scoped memory for tpu_custom_call.1']
    %10 = vsyncpa [#allocation4], 0
    %s11 = scalar_lea.sflag [#allocation4], 1
    %12 = vsyncpa %s11, 0
    loop: start=0, step=1, limit=4
    $region2: #{tpu_custom_call.1} parent=1 // loop_pre_header
      _
    $region3: #{tpu_custom_call.1} parent=1 // loop_header
      %s14 = sphi 0, %s18
      %p15 = scmp.ge.s32.totalorder %s14, 4
      %s24 = sphi 0, %s26
      %s27 = sphi 0, %s24
      %s28 = sphi 0, %s27
      %s44 = sphi 0, %s28
      %s48 = sphi 0, %s48
      %s50 = sphi 0, %s48
      %s51 = sphi 0, %s50
      %s65 = sphi 0, %s51
      %s69 = sphi 0, %s69
      %s71 = sphi 0, %s69
      %s72 = sphi 0, %s71
      %s86 = sphi 0, %s72
      %s90 = sphi 0, %s90
      %s92 = sphi 0, %s90
      %s93 = sphi 0, %s92
      %s107 = sphi 0, %s93
      %s113 = sphi 0, %s115
      %s116 = sphi 0, %s113
      %s117 = sphi 0, %s116
      %s133 = sphi 0, %s117
    $region4: #{tpu_custom_call.1} parent=1 // loop_header_branch
      %17 = sbr.rel (%p15) target = $region8
    $region5: #{tpu_custom_call.1} parent=1 // loop_body
      %s19 = ssub.s32 %s14, 1
      %s20 = ssub.s32 %s14, 2
      %s21 = sadd.s32 %s14, 1
      %s22 = ssub.s32 %s14, %s21
      %p23 = scmp.eq.s32.totalorder %s22, 0
      %s25 = sadd.s32 %s24, 1
      %s26 = scalar_select %p23, %s24, %s25
      %p29 = pneg %p23
      %p30 = scmp.eq.s32.totalorder %s14, 1
      %p31 = por %p29, %p30
      %p32 = scmp.ne.s32.totalorder %s24, %s27
      %p33 = scmp.eq.s32.totalorder %s14, 0
      %p34 = por %p32, %p33
      %p35 = scmp.ne.s32.totalorder %s24, %s27
      %p36 = scmp.eq.s32.totalorder %s19, 1
      %p37 = por %p35, %p36
      %p38 = scmp.ne.s32.totalorder %s27, %s28
      %p39 = scmp.eq.s32.totalorder %s19, 0
      %p40 = por %p38, %p39
      %p41 = scmp.ne.s32.totalorder %s27, %s28
      %p42 = scmp.eq.s32.totalorder %s20, 1
      %p43 = por %p41, %p42
      %p45 = scmp.ne.s32.totalorder %s28, %s44
      %p46 = scmp.eq.s32.totalorder %s20, 0
      %p47 = por %p45, %p46
      %s49 = sadd.s32 %s48, 1
      %p52 = scmp.eq.s32.totalorder %s14, 1
      %p53 = scmp.ne.s32.totalorder %s48, %s50
      %p54 = scmp.eq.s32.totalorder %s14, 0
      %p55 = por %p53, %p54
      %p56 = scmp.ne.s32.totalorder %s48, %s50
      %p57 = scmp.eq.s32.totalorder %s19, 1
      %p58 = por %p56, %p57
      %p59 = scmp.ne.s32.totalorder %s50, %s51
      %p60 = scmp.eq.s32.totalorder %s19, 0
      %p61 = por %p59, %p60
      %p62 = scmp.ne.s32.totalorder %s50, %s51
      %p63 = scmp.eq.s32.totalorder %s20, 1
      %p64 = por %p62, %p63
      %p66 = scmp.ne.s32.totalorder %s51, %s65
      %p67 = scmp.eq.s32.totalorder %s20, 0
      %p68 = por %p66, %p67
      %s70 = sadd.s32 %s69, 1
      %p73 = scmp.eq.s32.totalorder %s14, 1
      %p74 = scmp.ne.s32.totalorder %s69, %s71
      %p75 = scmp.eq.s32.totalorder %s14, 0
      %p76 = por %p74, %p75
      %p77 = scmp.ne.s32.totalorder %s69, %s71
      %p78 = scmp.eq.s32.totalorder %s19, 1
      %p79 = por %p77, %p78
      %p80 = scmp.ne.s32.totalorder %s71, %s72
      %p81 = scmp.eq.s32.totalorder %s19, 0
      %p82 = por %p80, %p81
      %p83 = scmp.ne.s32.totalorder %s71, %s72
      %p84 = scmp.eq.s32.totalorder %s20, 1
      %p85 = por %p83, %p84
      %p87 = scmp.ne.s32.totalorder %s72, %s86
      %p88 = scmp.eq.s32.totalorder %s20, 0
      %p89 = por %p87, %p88
      %s91 = sadd.s32 %s90, 1
      %p94 = scmp.eq.s32.totalorder %s14, 1
      %p95 = scmp.ne.s32.totalorder %s90, %s92
      %p96 = scmp.eq.s32.totalorder %s14, 0
      %p97 = por %p95, %p96
      %p98 = scmp.ne.s32.totalorder %s90, %s92
      %p99 = scmp.eq.s32.totalorder %s19, 1
      %p100 = por %p98, %p99
      %p101 = scmp.ne.s32.totalorder %s92, %s93
      %p102 = scmp.eq.s32.totalorder %s19, 0
      %p103 = por %p101, %p102
      %p104 = scmp.ne.s32.totalorder %s92, %s93
      %p105 = scmp.eq.s32.totalorder %s20, 1
      %p106 = por %p104, %p105
      %p108 = scmp.ne.s32.totalorder %s93, %s107
      %p109 = scmp.eq.s32.totalorder %s20, 0
      %p110 = por %p108, %p109
      %s111 = ssub.s32 %s14, %s21
      %p112 = scmp.eq.s32.totalorder %s111, 0
      %s114 = sadd.s32 %s113, 1
      %s115 = scalar_select %p112, %s113, %s114
      %p118 = pneg %p112
      %p119 = scmp.eq.s32.totalorder %s14, 1
      %p120 = por %p118, %p119
      %p121 = scmp.ne.s32.totalorder %s113, %s116
      %p122 = scmp.eq.s32.totalorder %s14, 0
      %p123 = por %p121, %p122
      %p124 = scmp.ne.s32.totalorder %s113, %s116
      %p125 = scmp.eq.s32.totalorder %s19, 1
      %p126 = por %p124, %p125
      %p127 = scmp.ne.s32.totalorder %s116, %s117
      %p128 = scmp.eq.s32.totalorder %s19, 0
      %p129 = por %p127, %p128
      %p130 = scmp.ne.s32.totalorder %s116, %s117
      %p131 = scmp.eq.s32.totalorder %s20, 1
      %p132 = por %p130, %p131
      %p134 = scmp.ne.s32.totalorder %s117, %s133
      %p135 = scmp.eq.s32.totalorder %s20, 0
      %p136 = por %p134, %p135
      %p137 = scmp.le.s32.totalorder 1, %s14
      %p138 = scmp.lt.s32.totalorder %s14, 3
      %p139 = pnand %p137, %p138
      %p140 = pneg %p139
      // Predicated region
      $region9: #{tpu_custom_call.1} parent=5 // pred_check
        _
      $region10: #{tpu_custom_call.1} parent=5 // pred_check_branch
        %142 = sbr.rel (%p139) target = $region12
      $region11: #{tpu_custom_call.1} parent=5 // pred_region
        %s143 = ssub.s32 %s14, 1
        // Predicated region
        $region13: #{tpu_custom_call.1} parent=11 // pred_check
          %p144 = pneg %p61
        $region14: #{tpu_custom_call.1} parent=11 // pred_check_branch
          %146 = sbr.rel (%p144) target = $region16
        $region15: #{tpu_custom_call.1} parent=11 // pred_region
          _
        $region16: #{tpu_custom_call.1} parent=11 // pred_fallthru
          _
        // Predicated region
        $region17: #{tpu_custom_call.1} parent=11 // pred_check
          %p147 = pneg %p82
        $region18: #{tpu_custom_call.1} parent=11 // pred_check_branch
          %149 = sbr.rel (%p147) target = $region20
        $region19: #{tpu_custom_call.1} parent=11 // pred_region
          _
        $region20: #{tpu_custom_call.1} parent=11 // pred_fallthru
          _
        // Predicated region
        $region21: #{tpu_custom_call.1} parent=11 // pred_check
          %p150 = pneg %p103
        $region22: #{tpu_custom_call.1} parent=11 // pred_check_branch
          %152 = sbr.rel (%p150) target = $region24
        $region23: #{tpu_custom_call.1} parent=11 // pred_region
          _
        $region24: #{tpu_custom_call.1} parent=11 // pred_fallthru
          _
      $region12: #{tpu_custom_call.1} parent=5 // pred_fallthru
        _
      %p153 = scmp.lt.s32.totalorder %s14, 2
      // Predicated region
      $region25: #{tpu_custom_call.1} parent=5 // pred_check
        %p154 = pneg %p153
      $region26: #{tpu_custom_call.1} parent=5 // pred_check_branch
        %156 = sbr.rel (%p154) target = $region28
      $region27: #{tpu_custom_call.1} parent=5 // pred_region
        // Predicated region
        $region29: #{tpu_custom_call.1} parent=27 // pred_check
          %p157 = pneg %p34
        $region30: #{tpu_custom_call.1} parent=27 // pred_check_branch
          %159 = sbr.rel (%p157) target = $region32
        $region31: #{tpu_custom_call.1} parent=27 // pred_region
          %p160 = scmp.lt.s32.totalorder %s14, 1
          %s161 = scalar_select %p160, %s14, 1
          %s162 = smul.addr %s161, 8
          %s163 = smul.addr %s162, 8
          %s164 = scalar_lea.vmem %s0, %s163
        $region32: #{tpu_custom_call.1} parent=27 // pred_fallthru
          _
      $region28: #{tpu_custom_call.1} parent=5 // pred_fallthru
        _
      %p165 = scmp.le.s32.totalorder 1, %s14
      %p166 = scmp.lt.s32.totalorder %s14, 3
      %p167 = pnand %p165, %p166
      %p168 = pneg %p167
      // Predicated region
      $region33: #{tpu_custom_call.1} parent=5 // pred_check
        _
      $region34: #{tpu_custom_call.1} parent=5 // pred_check_branch
        %170 = sbr.rel (%p167) target = $region36
      $region35: #{tpu_custom_call.1} parent=5 // pred_region
        %s171 = ssub.s32 %s14, 1
        %p172 = scmp.lt.s32.totalorder %s19, 1
        %s173 = scalar_select %p172, %s19, 1
        %s174 = smul.addr %s173, 8
        %s175 = smul.addr %s174, 8
        %s176 = scalar_lea.vmem %s0, %s175
        %p177 = pneg %p40
        %p178 = pneg %p37
        %p179 = pneg %p61
        %p180 = pneg %p58
        %p181 = pneg %p82
        %p182 = pneg %p79
        %p183 = pneg %p103
        %p184 = pneg %p100
        %p185 = pneg %p129
        %p186 = pneg %p126
        %s187 = sand.u32 %s116, 1
        %s188 = scalar_lea.sflag [#allocation4], %s187
        %s189 = sand.u32 %s116, 1
        %s190 = smul.addr %s189, 64
        %s191 = scalar_lea.vmem [#allocation3], %s190
        %p192 = scmp.lt.s32.totalorder %s19, 1
        %s193 = scalar_select %p192, %s19, 1
        %s194 = smul.addr %s193, 8
        %s195 = smul.addr %s194, 8
        %s196 = scalar_lea.vmem %s0, %s195
        %v198 = vld [vmem:[%s196] sm:$0xff]
        %v199 = vld [vmem:[%s196 + $0x8] sm:$0xff]
        %v200 = vld [vmem:[%s196 + $0x10] sm:$0xff]
        %v201 = vld [vmem:[%s196 + $0x18] sm:$0xff]
        %v202 = vld [vmem:[%s196 + $0x20] sm:$0xff]
        %v203 = vld [vmem:[%s196 + $0x28] sm:$0xff]
        %v204 = vld [vmem:[%s196 + $0x30] sm:$0xff]
        %v205 = vld [vmem:[%s196 + $0x38] sm:$0xff]
        %v206 = vld [vmem:[%s1] sm:$0xff]
        %v207 = vld [vmem:[%s1 + $0x8] sm:$0xff]
        %v208 = vld [vmem:[%s1 + $0x10] sm:$0xff]
        %v209 = vld [vmem:[%s1 + $0x18] sm:$0xff]
        %v210 = vld [vmem:[%s1 + $0x20] sm:$0xff]
        %v211 = vld [vmem:[%s1 + $0x28] sm:$0xff]
        %v212 = vld [vmem:[%s1 + $0x30] sm:$0xff]
        %v213 = vld [vmem:[%s2] sm:$0xff]
        %v214 = vld [vmem:[%s2 + $0x8] sm:$0xff]
        %v215 = vld [vmem:[%s2 + $0x10] sm:$0xff]
        %v216 = vld [vmem:[%s2 + $0x18] sm:$0xff]
        %v217 = vld [vmem:[%s2 + $0x20] sm:$0xff]
        %v218 = vld [vmem:[%s2 + $0x28] sm:$0xff]
        %v219 = vld [vmem:[%s2 + $0x30] sm:$0xff]
        %221 = vset.pattern.permute.xlu0 0
        %222 = vperm.xlu0 %221, %v213
        %v223 = vpop.permute.xlu0 %222
        %226 = vset.pattern.permute.xlu0 0
        %227 = vperm.xlu0 %226, %v214
        %v228 = vpop.permute.xlu0 %227
        %231 = vset.pattern.permute.xlu0 0
        %232 = vperm.xlu0 %231, %v215
        %v233 = vpop.permute.xlu0 %232
        %236 = vset.pattern.permute.xlu0 0
        %237 = vperm.xlu0 %236, %v216
        %v238 = vpop.permute.xlu0 %237
        %241 = vset.pattern.permute.xlu0 0
        %242 = vperm.xlu0 %241, %v217
        %v243 = vpop.permute.xlu0 %242
        %246 = vset.pattern.permute.xlu0 0
        %247 = vperm.xlu0 %246, %v218
        %v248 = vpop.permute.xlu0 %247
        %251 = vset.pattern.permute.xlu0 0
        %252 = vperm.xlu0 %251, %v219
        %v253 = vpop.permute.xlu0 %252
        %vm255 = vcmask 261120
        %v257 = vsel %vm255, %v206, 0
        %v260 = vsel %vm255, %v207, 0
        %v263 = vsel %vm255, %v208, 0
        %v266 = vsel %vm255, %v209, 0
        %v269 = vsel %vm255, %v210, 0
        %v272 = vsel %vm255, %v211, 0
        %v275 = vsel %vm255, %v212, 0
        %277 = vmatprep.subr.mxu0 %v199
        %278 = vmatpush1.msra.mxu0 %v198
        %279 = vmatprep.subr.mxu0 %v201
        %280 = vmatpush1.msra.mxu0 %v200
        %281 = vmatprep.subr.mxu0 %v203
        %282 = vmatpush1.msra.mxu0 %v202
        %283 = vmatprep.subr.mxu0 %v205
        %284 = vmatpush1.msra.mxu0 %v204
        %285 = vmatprep.subr.mxu0 0.0
        %286 = vmatpush1.msra.mxu0 0.0
        %287 = vmatprep.subr.mxu0 0.0
        %288 = vmatpush1.msra.mxu0 0.0
        %289 = vmatprep.subr.mxu0 0.0
        %290 = vmatpush1.msra.mxu0 0.0
        %291 = vmatprep.subr.mxu0 0.0
        %292 = vmatpush1.msra.mxu0 0.0
        %293 = vmatprep.subr.mxu0 0.0
        %294 = vmatpush1.msra.mxu0 0.0
        %295 = vmatprep.subr.mxu0 0.0
        %296 = vmatpush1.msra.mxu0 0.0
        %297 = vmatprep.subr.mxu0 0.0
        %298 = vmatpush1.msra.mxu0 0.0
        %299 = vmatprep.subr.mxu0 0.0
        %300 = vmatpush1.msra.mxu0 0.0
        %301 = vmatprep.subr.mxu0 0.0
        %302 = vmatpush1.msra.mxu0 0.0
        %303 = vmatprep.subr.mxu0 0.0
        %304 = vmatpush1.msra.mxu0 0.0
        %305 = vmatprep.subr.mxu0 0.0
        %306 = vmatpush1.msra.mxu0 0.0
        %307 = vmatprep.subr.mxu0 0.0
        %308 = vmatpush1.msra.mxu0 0.0
        %309 = vmatprep.subr.mxu0 0.0
        %310 = vmatpush1.msra.mxu0 0.0
        %311 = vmatprep.subr.mxu0 0.0
        %312 = vmatpush1.msra.mxu0 0.0
        %313 = vmatprep.subr.mxu0 0.0
        %314 = vmatpush1.msra.mxu0 0.0
        %315 = vmatprep.subr.mxu0 0.0
        %316 = vmatpush1.msra.mxu0 0.0
        %317 = vmatprep.subr.mxu0 0.0
        %318 = vmatpush1.msra.mxu0 0.0
        %319 = vmatprep.subr.mxu0 0.0
        %320 = vmatpush1.msra.mxu0 0.0
        %321 = vmatprep.subr.mxu0 0.0
        %322 = vmatpush1.msra.mxu0 0.0
        %323 = vmatprep.subr.mxu0 0.0
        %324 = vmatpush1.msra.mxu0 0.0
        %325 = vmatprep.subr.mxu0 0.0
        %326 = vmatpush1.msra.mxu0 0.0
        %327 = vmatprep.subr.mxu0 0.0
        %328 = vmatpush1.msra.mxu0 0.0
        %329 = vmatprep.subr.mxu0 0.0
        %330 = vmatpush1.msra.mxu0 0.0
        %331 = vmatprep.subr.mxu0 0.0
        %332 = vmatpush1.msra.mxu0 0.0
        %333 = vmatprep.subr.mxu0 0.0
        %334 = vmatpush1.msra.mxu0 0.0
        %335 = vmatprep.subr.mxu0 0.0
        %336 = vmatpush1.msra.mxu0 0.0
        %337 = vmatprep.subr.mxu0 0.0
        %338 = vmatpush1.msra.mxu0 0.0
        %339 = vmatprep.subr.mxu0 0.0
        %340 = vmatpush1.msra.mxu0 0.0
        %341 = vmatprep.mubr.f32.mxu0 0.0
        %342 = vmatmul.mubr.f32.gmra.mrb[0].mxu0 %v257
        %v343 = vpop.f32.mrb[0].mxu0
        %v344 = vadd.f32 %v223, %v343
        %v345 = vpop.f32.mrb[0].mxu0
        %v346 = vadd.f32 %v223, %v345
        %347 = vmatprep.mubr.f32.mxu0 0.0
        %348 = vmatmul.mubr.f32.gmra.mrb[0].mxu0 %v260
        %v349 = vpop.f32.mrb[0].mxu0
        %v350 = vadd.f32 %v228, %v349
        %v351 = vpop.f32.mrb[0].mxu0
        %v352 = vadd.f32 %v228, %v351
        %353 = vmatprep.mubr.f32.mxu0 0.0
        %354 = vmatmul.mubr.f32.gmra.mrb[0].mxu0 %v263
        %v355 = vpop.f32.mrb[0].mxu0
        %v356 = vadd.f32 %v233, %v355
        %v357 = vpop.f32.mrb[0].mxu0
        %v358 = vadd.f32 %v233, %v357
        %359 = vmatprep.mubr.f32.mxu0 0.0
        %360 = vmatmul.mubr.f32.gmra.mrb[0].mxu0 %v266
        %v361 = vpop.f32.mrb[0].mxu0
        %v362 = vadd.f32 %v238, %v361
        %v363 = vpop.f32.mrb[0].mxu0
        %v364 = vadd.f32 %v238, %v363
        %365 = vmatprep.mubr.f32.mxu0 0.0
        %366 = vmatmul.mubr.f32.gmra.mrb[0].mxu0 %v269
        %v367 = vpop.f32.mrb[0].mxu0
        %v368 = vadd.f32 %v243, %v367
        %v369 = vpop.f32.mrb[0].mxu0
        %v370 = vadd.f32 %v243, %v369
        %371 = vmatprep.mubr.f32.mxu0 0.0
        %372 = vmatmul.mubr.f32.gmra.mrb[0].mxu0 %v272
        %v373 = vpop.f32.mrb[0].mxu0
        %v374 = vadd.f32 %v248, %v373
        %v375 = vpop.f32.mrb[0].mxu0
        %v376 = vadd.f32 %v248, %v375
        %377 = vmatprep.mubr.f32.mxu0 0.0
        %378 = vmatmul.mubr.f32.gmra.mrb[0].mxu0 %v275
        %v379 = vpop.f32.mrb[0].mxu0
        %v380 = vadd.f32 %v253, %v379
        %v381 = vpop.f32.mrb[0].mxu0
        %v382 = vadd.f32 %v253, %v381
        %383 = vdwg.mxu0
        %v384 = vpack.c.bf16 %v344, %v344
        %v385 = vpack.c.bf16 %v346, %v346
        %v386 = vpack.c.bf16 %v350, %v350
        %v387 = vpack.c.bf16 %v352, %v352
        %388 = vxpose.xlu0.c.b16.start [1/8] %v384, 128
        %389 = vxpose.xlu0.c.b16.cont [2/8] 0, 128
        %390 = vxpose.xlu0.c.b16.cont [3/8] 0, 128
        %391 = vxpose.xlu0.c.b16.cont [4/8] 0, 128
        %392 = vxpose.xlu0.c.b16.cont [5/8] 0, 128
        %393 = vxpose.xlu0.c.b16.cont [6/8] 0, 128
        %394 = vxpose.xlu0.c.b16.cont [7/8] 0, 128
        %395 = vxpose.xlu0.c.b16.end [8/8] 0, 128
        %v396 = vpop.trf.xlu0
        %v397 = vpop.trf.xlu0
        %v398 = vpop.trf.xlu0
        %v399 = vpop.trf.xlu0
        %v400 = vpop.trf.xlu0
        %v401 = vpop.trf.xlu0
        %v402 = vpop.trf.xlu0
        %v403 = vpop.trf.xlu0
        %404 = vxpose.xlu0.c.b16.start [1/8] %v385, 128
        %405 = vxpose.xlu0.c.b16.cont [2/8] 0, 128
        %406 = vxpose.xlu0.c.b16.cont [3/8] 0, 128
        %407 = vxpose.xlu0.c.b16.cont [4/8] 0, 128
        %408 = vxpose.xlu0.c.b16.cont [5/8] 0, 128
        %409 = vxpose.xlu0.c.b16.cont [6/8] 0, 128
        %410 = vxpose.xlu0.c.b16.cont [7/8] 0, 128
        %411 = vxpose.xlu0.c.b16.end [8/8] 0, 128
        %v412 = vpop.trf.xlu0
        %v413 = vpop.trf.xlu0
        %v414 = vpop.trf.xlu0
        %v415 = vpop.trf.xlu0
        %v416 = vpop.trf.xlu0
        %v417 = vpop.trf.xlu0
        %v418 = vpop.trf.xlu0
        %v419 = vpop.trf.xlu0
        %vm420 = vcmask 64512
        %v422 = vsel %vm420, %v396, 0
        %v425 = vsel %vm420, %v397, 0
        %v428 = vsel %vm420, %v398, 0
        %v431 = vsel %vm420, %v399, 0
        %v434 = vsel %vm420, %v400, 0
        %v437 = vsel %vm420, %v401, 0
        %v440 = vsel %vm420, %v402, 0
        %v443 = vsel %vm420, %v403, 0
        %v446 = vsel %vm420, %v412, 0
        %v449 = vsel %vm420, %v413, 0
        %v452 = vsel %vm420, %v414, 0
        %v455 = vsel %vm420, %v415, 0
        %v458 = vsel %vm420, %v416, 0
        %v461 = vsel %vm420, %v417, 0
        %v464 = vsel %vm420, %v418, 0
        %v467 = vsel %vm420, %v419, 0
        %vm469 = vcmask 1043456
        %v471 = vsel %vm469, %v386, 0
        %v474 = vsel %vm469, %v387, 0
        %476 = vmatprep.subr.bf16.mxu0 %v474
        %477 = vmatpush1.bf16.msra.mxu0 %v471
        %478 = vmatprep.subr.bf16.mxu0 0
        %479 = vmatpush1.bf16.msra.mxu0 0
        %480 = vmatprep.subr.bf16.mxu0 0
        %481 = vmatpush1.bf16.msra.mxu0 0
        %482 = vmatprep.subr.bf16.mxu0 0
        %483 = vmatpush1.bf16.msra.mxu0 0
        %484 = vmatprep.subr.bf16.mxu0 0
        %485 = vmatpush1.bf16.msra.mxu0 0
        %486 = vmatprep.subr.bf16.mxu0 0
        %487 = vmatpush1.bf16.msra.mxu0 0
        %488 = vmatprep.subr.bf16.mxu0 0
        %489 = vmatpush1.bf16.msra.mxu0 0
        %490 = vmatprep.subr.bf16.mxu0 0
        %491 = vmatpush1.bf16.msra.mxu0 0
        %492 = vmatprep.subr.bf16.mxu0 0
        %493 = vmatpush1.bf16.msra.mxu0 0
        %494 = vmatprep.subr.bf16.mxu0 0
        %495 = vmatpush1.bf16.msra.mxu0 0
        %496 = vmatprep.subr.bf16.mxu0 0
        %497 = vmatpush1.bf16.msra.mxu0 0
        %498 = vmatprep.subr.bf16.mxu0 0
        %499 = vmatpush1.bf16.msra.mxu0 0
        %500 = vmatprep.subr.bf16.mxu0 0
        %501 = vmatpush1.bf16.msra.mxu0 0
        %502 = vmatprep.subr.bf16.mxu0 0
        %503 = vmatpush1.bf16.msra.mxu0 0
        %504 = vmatprep.subr.bf16.mxu0 0
        %505 = vmatpush1.bf16.msra.mxu0 0
        %506 = vmatprep.subr.bf16.mxu0 0
        %507 = vmatpush1.bf16.msra.mxu0 0
        %508 = vmatprep.mubr.bf16.mxu0 0
        %509 = vmatmul.mubr.bf16.gmra.mrb[0].mxu0 %v422
        %v510 = vpop.f32.mrb[0].mxu0
        %v511 = vadd.f32 0.0, %v510
        %v512 = vpop.f32.mrb[0].mxu0
        %v513 = vadd.f32 0.0, %v512
        %v514 = vpop.f32.mrb[0].mxu0
        %v515 = vadd.f32 0.0, %v514
        %v516 = vpop.f32.mrb[0].mxu0
        %v517 = vadd.f32 0.0, %v516
        %518 = vmatprep.mubr.bf16.mxu0 0
        %519 = vmatmul.mubr.bf16.gmra.mrb[0].mxu0 %v425
        %v520 = vpop.f32.mrb[0].mxu0
        %v521 = vadd.f32 0.0, %v520
        %v522 = vpop.f32.mrb[0].mxu0
        %v523 = vadd.f32 0.0, %v522
        %v524 = vpop.f32.mrb[0].mxu0
        %v525 = vadd.f32 0.0, %v524
        %v526 = vpop.f32.mrb[0].mxu0
        %v527 = vadd.f32 0.0, %v526
        %528 = vmatprep.mubr.bf16.mxu0 0
        %529 = vmatmul.mubr.bf16.gmra.mrb[0].mxu0 %v428
        %v530 = vpop.f32.mrb[0].mxu0
        %v531 = vadd.f32 0.0, %v530
        %v532 = vpop.f32.mrb[0].mxu0
        %v533 = vadd.f32 0.0, %v532
        %v534 = vpop.f32.mrb[0].mxu0
        %v535 = vadd.f32 0.0, %v534
        %v536 = vpop.f32.mrb[0].mxu0
        %v537 = vadd.f32 0.0, %v536
        %538 = vmatprep.mubr.bf16.mxu0 0
        %539 = vmatmul.mubr.bf16.gmra.mrb[0].mxu0 %v431
        %v540 = vpop.f32.mrb[0].mxu0
        %v541 = vadd.f32 0.0, %v540
        %v542 = vpop.f32.mrb[0].mxu0
        %v543 = vadd.f32 0.0, %v542
        %v544 = vpop.f32.mrb[0].mxu0
        %v545 = vadd.f32 0.0, %v544
        %v546 = vpop.f32.mrb[0].mxu0
        %v547 = vadd.f32 0.0, %v546
        %548 = vmatprep.mubr.bf16.mxu0 0
        %549 = vmatmul.mubr.bf16.gmra.mrb[0].mxu0 %v434
        %v550 = vpop.f32.mrb[0].mxu0
        %v551 = vadd.f32 0.0, %v550
        %v552 = vpop.f32.mrb[0].mxu0
        %v553 = vadd.f32 0.0, %v552
        %v554 = vpop.f32.mrb[0].mxu0
        %v555 = vadd.f32 0.0, %v554
        %v556 = vpop.f32.mrb[0].mxu0
        %v557 = vadd.f32 0.0, %v556
        %558 = vmatprep.mubr.bf16.mxu0 0
        %559 = vmatmul.mubr.bf16.gmra.mrb[0].mxu0 %v437
        %v560 = vpop.f32.mrb[0].mxu0
        %v561 = vadd.f32 0.0, %v560
        %v562 = vpop.f32.mrb[0].mxu0
        %v563 = vadd.f32 0.0, %v562
        %v564 = vpop.f32.mrb[0].mxu0
        %v565 = vadd.f32 0.0, %v564
        %v566 = vpop.f32.mrb[0].mxu0
        %v567 = vadd.f32 0.0, %v566
        %568 = vmatprep.mubr.bf16.mxu0 0
        %569 = vmatmul.mubr.bf16.gmra.mrb[0].mxu0 %v440
        %v570 = vpop.f32.mrb[0].mxu0
        %v571 = vadd.f32 0.0, %v570
        %v572 = vpop.f32.mrb[0].mxu0
        %v573 = vadd.f32 0.0, %v572
        %v574 = vpop.f32.mrb[0].mxu0
        %v575 = vadd.f32 0.0, %v574
        %v576 = vpop.f32.mrb[0].mxu0
        %v577 = vadd.f32 0.0, %v576
        %578 = vmatprep.mubr.bf16.mxu0 0
        %579 = vmatmul.mubr.bf16.gmra.mrb[0].mxu0 %v443
        %v580 = vpop.f32.mrb[0].mxu0
        %v581 = vadd.f32 0.0, %v580
        %v582 = vpop.f32.mrb[0].mxu0
        %v583 = vadd.f32 0.0, %v582
        %v584 = vpop.f32.mrb[0].mxu0
        %v585 = vadd.f32 0.0, %v584
        %v586 = vpop.f32.mrb[0].mxu0
        %v587 = vadd.f32 0.0, %v586
        %588 = vmatprep.mubr.bf16.mxu0 0
        %589 = vmatmul.mubr.bf16.gmra.mrb[0].mxu0 %v446
        %v590 = vpop.f32.mrb[0].mxu0
        %v591 = vadd.f32 0.0, %v590
        %v592 = vpop.f32.mrb[0].mxu0
        %v593 = vadd.f32 0.0, %v592
        %v594 = vpop.f32.mrb[0].mxu0
        %v595 = vadd.f32 0.0, %v594
        %v596 = vpop.f32.mrb[0].mxu0
        %v597 = vadd.f32 0.0, %v596
        %598 = vmatprep.mubr.bf16.mxu0 0
        %599 = vmatmul.mubr.bf16.gmra.mrb[0].mxu0 %v449
        %v600 = vpop.f32.mrb[0].mxu0
        %v601 = vadd.f32 0.0, %v600
        %v602 = vpop.f32.mrb[0].mxu0
        %v603 = vadd.f32 0.0, %v602
        %v604 = vpop.f32.mrb[0].mxu0
        %v605 = vadd.f32 0.0, %v604
        %v606 = vpop.f32.mrb[0].mxu0
        %v607 = vadd.f32 0.0, %v606
        %608 = vmatprep.mubr.bf16.mxu0 0
        %609 = vmatmul.mubr.bf16.gmra.mrb[0].mxu0 %v452
        %v610 = vpop.f32.mrb[0].mxu0
        %v611 = vadd.f32 0.0, %v610
        %v612 = vpop.f32.mrb[0].mxu0
        %v613 = vadd.f32 0.0, %v612
        %v614 = vpop.f32.mrb[0].mxu0
        %v615 = vadd.f32 0.0, %v614
        %v616 = vpop.f32.mrb[0].mxu0
        %v617 = vadd.f32 0.0, %v616
        %618 = vmatprep.mubr.bf16.mxu0 0
        %619 = vmatmul.mubr.bf16.gmra.mrb[0].mxu0 %v455
        %v620 = vpop.f32.mrb[0].mxu0
        %v621 = vadd.f32 0.0, %v620
        %v622 = vpop.f32.mrb[0].mxu0
        %v623 = vadd.f32 0.0, %v622
        %v624 = vpop.f32.mrb[0].mxu0
        %v625 = vadd.f32 0.0, %v624
        %v626 = vpop.f32.mrb[0].mxu0
        %v627 = vadd.f32 0.0, %v626
        %628 = vmatprep.mubr.bf16.mxu0 0
        %629 = vmatmul.mubr.bf16.gmra.mrb[0].mxu0 %v458
        %v630 = vpop.f32.mrb[0].mxu0
        %v631 = vadd.f32 0.0, %v630
        %v632 = vpop.f32.mrb[0].mxu0
        %v633 = vadd.f32 0.0, %v632
        %v634 = vpop.f32.mrb[0].mxu0
        %v635 = vadd.f32 0.0, %v634
        %v636 = vpop.f32.mrb[0].mxu0
        %v637 = vadd.f32 0.0, %v636
        %638 = vmatprep.mubr.bf16.mxu0 0
        %639 = vmatmul.mubr.bf16.gmra.mrb[0].mxu0 %v461
        %v640 = vpop.f32.mrb[0].mxu0
        %v641 = vadd.f32 0.0, %v640
        %v642 = vpop.f32.mrb[0].mxu0
        %v643 = vadd.f32 0.0, %v642
        %v644 = vpop.f32.mrb[0].mxu0
        %v645 = vadd.f32 0.0, %v644
        %v646 = vpop.f32.mrb[0].mxu0
        %v647 = vadd.f32 0.0, %v646
        %648 = vmatprep.mubr.bf16.mxu0 0
        %649 = vmatmul.mubr.bf16.gmra.mrb[0].mxu0 %v464
        %v650 = vpop.f32.mrb[0].mxu0
        %v651 = vadd.f32 0.0, %v650
        %v652 = vpop.f32.mrb[0].mxu0
        %v653 = vadd.f32 0.0, %v652
        %v654 = vpop.f32.mrb[0].mxu0
        %v655 = vadd.f32 0.0, %v654
        %v656 = vpop.f32.mrb[0].mxu0
        %v657 = vadd.f32 0.0, %v656
        %658 = vmatprep.mubr.bf16.mxu0 0
        %659 = vmatmul.mubr.bf16.gmra.mrb[0].mxu0 %v467
        %v660 = vpop.f32.mrb[0].mxu0
        %v661 = vadd.f32 0.0, %v660
        %v662 = vpop.f32.mrb[0].mxu0
        %v663 = vadd.f32 0.0, %v662
        %v664 = vpop.f32.mrb[0].mxu0
        %v665 = vadd.f32 0.0, %v664
        %v666 = vpop.f32.mrb[0].mxu0
        %v667 = vadd.f32 0.0, %v666
        %668 = vdwg.mxu0
        %v669 = vmax.f32 %v511, %v513
        %670 = vmax.xlane.f32.xlu0 %v669
        %v671 = vpop.xlane.xlu0 %670
        %v672 = vmax.f32 %v515, %v517
        %673 = vmax.xlane.f32.xlu0 %v672
        %v674 = vpop.xlane.xlu0 %673
        %v675 = vmax.f32 %v521, %v523
        %676 = vmax.xlane.f32.xlu0 %v675
        %v677 = vpop.xlane.xlu0 %676
        %v678 = vmax.f32 %v525, %v527
        %679 = vmax.xlane.f32.xlu0 %v678
        %v680 = vpop.xlane.xlu0 %679
        %v681 = vmax.f32 %v531, %v533
        %682 = vmax.xlane.f32.xlu0 %v681
        %v683 = vpop.xlane.xlu0 %682
        %v684 = vmax.f32 %v535, %v537
        %685 = vmax.xlane.f32.xlu0 %v684
        %v686 = vpop.xlane.xlu0 %685
        %v687 = vmax.f32 %v541, %v543
        %688 = vmax.xlane.f32.xlu0 %v687
        %v689 = vpop.xlane.xlu0 %688
        %v690 = vmax.f32 %v545, %v547
        %691 = vmax.xlane.f32.xlu0 %v690
        %v692 = vpop.xlane.xlu0 %691
        %v693 = vmax.f32 %v551, %v553
        %694 = vmax.xlane.f32.xlu0 %v693
        %v695 = vpop.xlane.xlu0 %694
        %v696 = vmax.f32 %v555, %v557
        %697 = vmax.xlane.f32.xlu0 %v696
        %v698 = vpop.xlane.xlu0 %697
        %v699 = vmax.f32 %v561, %v563
        %700 = vmax.xlane.f32.xlu0 %v699
        %v701 = vpop.xlane.xlu0 %700
        %v702 = vmax.f32 %v565, %v567
        %703 = vmax.xlane.f32.xlu0 %v702
        %v704 = vpop.xlane.xlu0 %703
        %v705 = vmax.f32 %v571, %v573
        %706 = vmax.xlane.f32.xlu0 %v705
        %v707 = vpop.xlane.xlu0 %706
        %v708 = vmax.f32 %v575, %v577
        %709 = vmax.xlane.f32.xlu0 %v708
        %v710 = vpop.xlane.xlu0 %709
        %v711 = vmax.f32 %v581, %v583
        %712 = vmax.xlane.f32.xlu0 %v711
        %v713 = vpop.xlane.xlu0 %712
        %v714 = vmax.f32 %v585, %v587
        %715 = vmax.xlane.f32.xlu0 %v714
        %v716 = vpop.xlane.xlu0 %715
        %v717 = vmax.f32 %v591, %v593
        %718 = vmax.xlane.f32.xlu0 %v717
        %v719 = vpop.xlane.xlu0 %718
        %v720 = vmax.f32 %v595, %v597
        %721 = vmax.xlane.f32.xlu0 %v720
        %v722 = vpop.xlane.xlu0 %721
        %v723 = vmax.f32 %v601, %v603
        %724 = vmax.xlane.f32.xlu0 %v723
        %v725 = vpop.xlane.xlu0 %724
        %v726 = vmax.f32 %v605, %v607
        %727 = vmax.xlane.f32.xlu0 %v726
        %v728 = vpop.xlane.xlu0 %727
        %v729 = vmax.f32 %v611, %v613
        %730 = vmax.xlane.f32.xlu0 %v729
        %v731 = vpop.xlane.xlu0 %730
        %v732 = vmax.f32 %v615, %v617
        %733 = vmax.xlane.f32.xlu0 %v732
        %v734 = vpop.xlane.xlu0 %733
        %v735 = vmax.f32 %v621, %v623
        %736 = vmax.xlane.f32.xlu0 %v735
        %v737 = vpop.xlane.xlu0 %736
        %v738 = vmax.f32 %v625, %v627
        %739 = vmax.xlane.f32.xlu0 %v738
        %v740 = vpop.xlane.xlu0 %739
        %v741 = vmax.f32 %v631, %v633
        %742 = vmax.xlane.f32.xlu0 %v741
        %v743 = vpop.xlane.xlu0 %742
        %v744 = vmax.f32 %v635, %v637
        %745 = vmax.xlane.f32.xlu0 %v744
        %v746 = vpop.xlane.xlu0 %745
        %v747 = vmax.f32 %v641, %v643
        %748 = vmax.xlane.f32.xlu0 %v747
        %v749 = vpop.xlane.xlu0 %748
        %v750 = vmax.f32 %v645, %v647
        %751 = vmax.xlane.f32.xlu0 %v750
        %v752 = vpop.xlane.xlu0 %751
        %v753 = vmax.f32 %v651, %v653
        %754 = vmax.xlane.f32.xlu0 %v753
        %v755 = vpop.xlane.xlu0 %754
        %v756 = vmax.f32 %v655, %v657
        %757 = vmax.xlane.f32.xlu0 %v756
        %v758 = vpop.xlane.xlu0 %757
        %v759 = vmax.f32 %v661, %v663
        %760 = vmax.xlane.f32.xlu0 %v759
        %v761 = vpop.xlane.xlu0 %760
        %v762 = vmax.f32 %v665, %v667
        %763 = vmax.xlane.f32.xlu0 %v762
        %v764 = vpop.xlane.xlu0 %763
        %v765 = vsub.f32 %v511, %v671
        %v766 = vsub.f32 %v513, %v671
        %v767 = vsub.f32 %v515, %v674
        %v768 = vsub.f32 %v517, %v674
        %v769 = vsub.f32 %v521, %v677
        %v770 = vsub.f32 %v523, %v677
        %v771 = vsub.f32 %v525, %v680
        %v772 = vsub.f32 %v527, %v680
        %v773 = vsub.f32 %v531, %v683
        %v774 = vsub.f32 %v533, %v683
        %v775 = vsub.f32 %v535, %v686
        %v776 = vsub.f32 %v537, %v686
        %v777 = vsub.f32 %v541, %v689
        %v778 = vsub.f32 %v543, %v689
        %v779 = vsub.f32 %v545, %v692
        %v780 = vsub.f32 %v547, %v692
        %v781 = vsub.f32 %v551, %v695
        %v782 = vsub.f32 %v553, %v695
        %v783 = vsub.f32 %v555, %v698
        %v784 = vsub.f32 %v557, %v698
        %v785 = vsub.f32 %v561, %v701
        %v786 = vsub.f32 %v563, %v701
        %v787 = vsub.f32 %v565, %v704
        %v788 = vsub.f32 %v567, %v704
        %v789 = vsub.f32 %v571, %v707
        %v790 = vsub.f32 %v573, %v707
        %v791 = vsub.f32 %v575, %v710
        %v792 = vsub.f32 %v577, %v710
        %v793 = vsub.f32 %v581, %v713
        %v794 = vsub.f32 %v583, %v713
        %v795 = vsub.f32 %v585, %v716
        %v796 = vsub.f32 %v587, %v716
        %v797 = vsub.f32 %v591, %v719
        %v798 = vsub.f32 %v593, %v719
        %v799 = vsub.f32 %v595, %v722
        %v800 = vsub.f32 %v597, %v722
        %v801 = vsub.f32 %v601, %v725
        %v802 = vsub.f32 %v603, %v725
        %v803 = vsub.f32 %v605, %v728
        %v804 = vsub.f32 %v607, %v728
        %v805 = vsub.f32 %v611, %v731
        %v806 = vsub.f32 %v613, %v731
        %v807 = vsub.f32 %v615, %v734
        %v808 = vsub.f32 %v617, %v734
        %v809 = vsub.f32 %v621, %v737
        %v810 = vsub.f32 %v623, %v737
        %v811 = vsub.f32 %v625, %v740
        %v812 = vsub.f32 %v627, %v740
        %v813 = vsub.f32 %v631, %v743
        %v814 = vsub.f32 %v633, %v743
        %v815 = vsub.f32 %v635, %v746
        %v816 = vsub.f32 %v637, %v746
        %v817 = vsub.f32 %v641, %v749
        %v818 = vsub.f32 %v643, %v749
        %v819 = vsub.f32 %v645, %v752
        %v820 = vsub.f32 %v647, %v752
        %v821 = vsub.f32 %v651, %v755
        %v822 = vsub.f32 %v653, %v755
        %v823 = vsub.f32 %v655, %v758
        %v824 = vsub.f32 %v657, %v758
        %v825 = vsub.f32 %v661, %v761
        %v826 = vsub.f32 %v663, %v761
        %v827 = vsub.f32 %v665, %v764
        %v828 = vsub.f32 %v667, %v764
        %v829 = vmul.f32 %v765, 1.442695
        %v830 = vpow.pop %v829
        %v831 = vmul.f32 %v766, 1.442695
        %v832 = vpow.pop %v831
        %v833 = vmul.f32 %v767, 1.442695
        %v834 = vpow.pop %v833
        %v835 = vmul.f32 %v768, 1.442695
        %v836 = vpow.pop %v835
        %v837 = vmul.f32 %v769, 1.442695
        %v838 = vpow.pop %v837
        %v839 = vmul.f32 %v770, 1.442695
        %v840 = vpow.pop %v839
        %v841 = vmul.f32 %v771, 1.442695
        %v842 = vpow.pop %v841
        %v843 = vmul.f32 %v772, 1.442695
        %v844 = vpow.pop %v843
        %v845 = vmul.f32 %v773, 1.442695
        %v846 = vpow.pop %v845
        %v847 = vmul.f32 %v774, 1.442695
        %v848 = vpow.pop %v847
        %v849 = vmul.f32 %v775, 1.442695
        %v850 = vpow.pop %v849
        %v851 = vmul.f32 %v776, 1.442695
        %v852 = vpow.pop %v851
        %v853 = vmul.f32 %v777, 1.442695
        %v854 = vpow.pop %v853
        %v855 = vmul.f32 %v778, 1.442695
        %v856 = vpow.pop %v855
        %v857 = vmul.f32 %v779, 1.442695
        %v858 = vpow.pop %v857
        %v859 = vmul.f32 %v780, 1.442695
        %v860 = vpow.pop %v859
        %v861 = vmul.f32 %v781, 1.442695
        %v862 = vpow.pop %v861
        %v863 = vmul.f32 %v782, 1.442695
        %v864 = vpow.pop %v863
        %v865 = vmul.f32 %v783, 1.442695
        %v866 = vpow.pop %v865
        %v867 = vmul.f32 %v784, 1.442695
        %v868 = vpow.pop %v867
        %v869 = vmul.f32 %v785, 1.442695
        %v870 = vpow.pop %v869
        %v871 = vmul.f32 %v786, 1.442695
        %v872 = vpow.pop %v871
        %v873 = vmul.f32 %v787, 1.442695
        %v874 = vpow.pop %v873
        %v875 = vmul.f32 %v788, 1.442695
        %v876 = vpow.pop %v875
        %v877 = vmul.f32 %v789, 1.442695
        %v878 = vpow.pop %v877
        %v879 = vmul.f32 %v790, 1.442695
        %v880 = vpow.pop %v879
        %v881 = vmul.f32 %v791, 1.442695
        %v882 = vpow.pop %v881
        %v883 = vmul.f32 %v792, 1.442695
        %v884 = vpow.pop %v883
        %v885 = vmul.f32 %v793, 1.442695
        %v886 = vpow.pop %v885
        %v887 = vmul.f32 %v794, 1.442695
        %v888 = vpow.pop %v887
        %v889 = vmul.f32 %v795, 1.442695
        %v890 = vpow.pop %v889
        %v891 = vmul.f32 %v796, 1.442695
        %v892 = vpow.pop %v891
        %v893 = vmul.f32 %v797, 1.442695
        %v894 = vpow.pop %v893
        %v895 = vmul.f32 %v798, 1.442695
        %v896 = vpow.pop %v895
        %v897 = vmul.f32 %v799, 1.442695
        %v898 = vpow.pop %v897
        %v899 = vmul.f32 %v800, 1.442695
        %v900 = vpow.pop %v899
        %v901 = vmul.f32 %v801, 1.442695
        %v902 = vpow.pop %v901
        %v903 = vmul.f32 %v802, 1.442695
        %v904 = vpow.pop %v903
        %v905 = vmul.f32 %v803, 1.442695
        %v906 = vpow.pop %v905
        %v907 = vmul.f32 %v804, 1.442695
        %v908 = vpow.pop %v907
        %v909 = vmul.f32 %v805, 1.442695
        %v910 = vpow.pop %v909
        %v911 = vmul.f32 %v806, 1.442695
        %v912 = vpow.pop %v911
        %v913 = vmul.f32 %v807, 1.442695
        %v914 = vpow.pop %v913
        %v915 = vmul.f32 %v808, 1.442695
        %v916 = vpow.pop %v915
        %v917 = vmul.f32 %v809, 1.442695
        %v918 = vpow.pop %v917
        %v919 = vmul.f32 %v810, 1.442695
        %v920 = vpow.pop %v919
        %v921 = vmul.f32 %v811, 1.442695
        %v922 = vpow.pop %v921
        %v923 = vmul.f32 %v812, 1.442695
        %v924 = vpow.pop %v923
        %v925 = vmul.f32 %v813, 1.442695
        %v926 = vpow.pop %v925
        %v927 = vmul.f32 %v814, 1.442695
        %v928 = vpow.pop %v927
        %v929 = vmul.f32 %v815, 1.442695
        %v930 = vpow.pop %v929
        %v931 = vmul.f32 %v816, 1.442695
        %v932 = vpow.pop %v931
        %v933 = vmul.f32 %v817, 1.442695
        %v934 = vpow.pop %v933
        %v935 = vmul.f32 %v818, 1.442695
        %v936 = vpow.pop %v935
        %v937 = vmul.f32 %v819, 1.442695
        %v938 = vpow.pop %v937
        %v939 = vmul.f32 %v820, 1.442695
        %v940 = vpow.pop %v939
        %v941 = vmul.f32 %v821, 1.442695
        %v942 = vpow.pop %v941
        %v943 = vmul.f32 %v822, 1.442695
        %v944 = vpow.pop %v943
        %v945 = vmul.f32 %v823, 1.442695
        %v946 = vpow.pop %v945
        %v947 = vmul.f32 %v824, 1.442695
        %v948 = vpow.pop %v947
        %v949 = vmul.f32 %v825, 1.442695
        %v950 = vpow.pop %v949
        %v951 = vmul.f32 %v826, 1.442695
        %v952 = vpow.pop %v951
        %v953 = vmul.f32 %v827, 1.442695
        %v954 = vpow.pop %v953
        %v955 = vmul.f32 %v828, 1.442695
        %v956 = vpow.pop %v955
        %v957 = vpack.c.bf16 %v362, %v356
        %v958 = vpack.c.bf16 %v364, %v358
        %v959 = vpack.c.bf16 %v374, %v368
        %v960 = vpack.c.bf16 %v376, %v370
        %v961 = vpack.c.bf16 %v380, %v380
        %v962 = vpack.c.bf16 %v382, %v382
        %v963 = vpack.c.bf16 %v834, %v830
        %v964 = vpack.c.bf16 %v836, %v832
        %v965 = vpack.c.bf16 %v842, %v838
        %v966 = vpack.c.bf16 %v844, %v840
        %v967 = vpack.c.bf16 %v850, %v846
        %v968 = vpack.c.bf16 %v852, %v848
        %v969 = vpack.c.bf16 %v858, %v854
        %v970 = vpack.c.bf16 %v860, %v856
        %v971 = vpack.c.bf16 %v866, %v862
        %v972 = vpack.c.bf16 %v868, %v864
        %v973 = vpack.c.bf16 %v874, %v870
        %v974 = vpack.c.bf16 %v876, %v872
        %v975 = vpack.c.bf16 %v882, %v878
        %v976 = vpack.c.bf16 %v884, %v880
        %v977 = vpack.c.bf16 %v890, %v886
        %v978 = vpack.c.bf16 %v892, %v888
        %v979 = vpack.c.bf16 %v898, %v894
        %v980 = vpack.c.bf16 %v900, %v896
        %v981 = vpack.c.bf16 %v906, %v902
        %v982 = vpack.c.bf16 %v908, %v904
        %v983 = vpack.c.bf16 %v914, %v910
        %v984 = vpack.c.bf16 %v916, %v912
        %v985 = vpack.c.bf16 %v922, %v918
        %v986 = vpack.c.bf16 %v924, %v920
        %v987 = vpack.c.bf16 %v930, %v926
        %v988 = vpack.c.bf16 %v932, %v928
        %v989 = vpack.c.bf16 %v938, %v934
        %v990 = vpack.c.bf16 %v940, %v936
        %v991 = vpack.c.bf16 %v946, %v942
        %v992 = vpack.c.bf16 %v948, %v944
        %v993 = vpack.c.bf16 %v954, %v950
        %v994 = vpack.c.bf16 %v956, %v952
        %995 = vmatprep.subr.bf16.mxu0 %v964
        %996 = vmatpush1.bf16.xpose.msra.mxu0 %v963
        %997 = vmatprep.subr.bf16.mxu0 %v966
        %998 = vmatpush1.bf16.xpose.msra.mxu0 %v965
        %999 = vmatprep.subr.bf16.mxu0 %v968
        %1000 = vmatpush1.bf16.xpose.msra.mxu0 %v967
        %1001 = vmatprep.subr.bf16.mxu0 %v970
        %1002 = vmatpush1.bf16.xpose.msra.mxu0 %v969
        %1003 = vmatprep.subr.bf16.mxu0 %v972
        %1004 = vmatpush1.bf16.xpose.msra.mxu0 %v971
        %1005 = vmatprep.subr.bf16.mxu0 %v974
        %1006 = vmatpush1.bf16.xpose.msra.mxu0 %v973
        %1007 = vmatprep.subr.bf16.mxu0 %v976
        %1008 = vmatpush1.bf16.xpose.msra.mxu0 %v975
        %1009 = vmatprep.subr.bf16.mxu0 %v978
        %1010 = vmatpush1.bf16.xpose.msra.mxu0 %v977
        %1011 = vmatprep.subr.bf16.mxu0 %v980
        %1012 = vmatpush1.bf16.xpose.msra.mxu0 %v979
        %1013 = vmatprep.subr.bf16.mxu0 %v982
        %1014 = vmatpush1.bf16.xpose.msra.mxu0 %v981
        %1015 = vmatprep.subr.bf16.mxu0 %v984
        %1016 = vmatpush1.bf16.xpose.msra.mxu0 %v983
        %1017 = vmatprep.subr.bf16.mxu0 %v986
        %1018 = vmatpush1.bf16.xpose.msra.mxu0 %v985
        %1019 = vmatprep.subr.bf16.mxu0 %v988
        %1020 = vmatpush1.bf16.xpose.msra.mxu0 %v987
        %1021 = vmatprep.subr.bf16.mxu0 %v990
        %1022 = vmatpush1.bf16.xpose.msra.mxu0 %v989
        %1023 = vmatprep.subr.bf16.mxu0 %v992
        %1024 = vmatpush1.bf16.xpose.msra.mxu0 %v991
        %1025 = vmatprep.subr.bf16.mxu0 %v994
        %1026 = vmatpush1.bf16.xpose.msra.mxu0 %v993
        %1027 = vmatprep.mubr.bf16.mxu0 %v958
        %1028 = vmatmul.mubr.bf16.gmra.mrb[0].mxu0 %v957
        %v1029 = vpop.f32.mrb[0].mxu0
        %v1030 = vadd.f32 0.0, %v1029
        %v1031 = vpop.f32.mrb[0].mxu0
        %v1032 = vadd.f32 0.0, %v1031
        %v1033 = vpop.f32.mrb[0].mxu0
        %v1034 = vadd.f32 0.0, %v1033
        %v1035 = vpop.f32.mrb[0].mxu0
        %v1036 = vadd.f32 0.0, %v1035
        %1037 = vmatprep.mubr.bf16.mxu0 %v960
        %1038 = vmatmul.mubr.bf16.gmra.mrb[0].mxu0 %v959
        %v1039 = vpop.f32.mrb[0].mxu0
        %v1040 = vadd.f32 0.0, %v1039
        %v1041 = vpop.f32.mrb[0].mxu0
        %v1042 = vadd.f32 0.0, %v1041
        %v1043 = vpop.f32.mrb[0].mxu0
        %v1044 = vadd.f32 0.0, %v1043
        %v1045 = vpop.f32.mrb[0].mxu0
        %v1046 = vadd.f32 0.0, %v1045
        %1047 = vmatprep.mubr.bf16.mxu0 %v962
        %1048 = vmatmul.mubr.bf16.gmra.mrb[0].mxu0 %v961
        %v1049 = vpop.f32.mrb[0].mxu0
        %v1050 = vadd.f32 0.0, %v1049
        %v1051 = vpop.f32.mrb[0].mxu0
        %v1052 = vadd.f32 0.0, %v1051
        %v1053 = vpop.f32.mrb[0].mxu0
        %v1054 = vpop.f32.mrb[0].mxu0
        %1055 = vdwg.mxu0
        %v1056 = vrcp.pop %v1050
        %v1057 = vrcp.pop %v1052
        %v1058 = vlaneseq
        %v1059 = vshrl.u32 %v1058, 7
        %v1060 = vsub.s32 0, %v1059
        %v1061 = vrot.slane %v1056, %v1060
        %v1062 = vlaneseq
        %v1063 = vshrl.u32 %v1062, 7
        %v1064 = vsub.s32 0, %v1063
        %v1065 = vrot.slane %v1057, %v1064
        %v1066 = vmul.f32 %v1030, %v1061
        %v1067 = vmul.f32 %v1032, %v1065
        %v1068 = vmul.f32 %v1034, %v1061
        %v1069 = vmul.f32 %v1036, %v1065
        %v1070 = vmul.f32 %v1040, %v1061
        %v1071 = vmul.f32 %v1042, %v1065
        %v1072 = vmul.f32 %v1044, %v1061
        %v1073 = vmul.f32 %v1046, %v1065
        %s1074 = sld [smem:[#allocation2]]
        %v1075 = vstv %s1074
        %v1076 = vmul.f32 %v1075, %v1066
        %v1077 = vmul.f32 %v1075, %v1067
        %v1078 = vmul.f32 %v1075, %v1068
        %v1079 = vmul.f32 %v1075, %v1069
        %v1080 = vmul.f32 %v1075, %v1070
        %v1081 = vmul.f32 %v1075, %v1071
        %v1082 = vmul.f32 %v1075, %v1072
        %v1083 = vmul.f32 %v1075, %v1073
        %v1084 = vadd.f32 %v1076, %v198
        %v1085 = vadd.f32 %v1077, %v199
        %v1086 = vadd.f32 %v1078, %v200
        %v1087 = vadd.f32 %v1079, %v201
        %v1088 = vadd.f32 %v1080, %v202
        %v1089 = vadd.f32 %v1081, %v203
        %v1090 = vadd.f32 %v1082, %v204
        %v1091 = vadd.f32 %v1083, %v205
        %1092 = vst [vmem:[%s191] sm:$0xff] %v1084
        %1093 = vst [vmem:[%s191 + $0x8] sm:$0xff] %v1085
        %1094 = vst [vmem:[%s191 + $0x10] sm:$0xff] %v1086
        %1095 = vst [vmem:[%s191 + $0x18] sm:$0xff] %v1087
        %1096 = vst [vmem:[%s191 + $0x20] sm:$0xff] %v1088
        %1097 = vst [vmem:[%s191 + $0x28] sm:$0xff] %v1089
        %1098 = vst [vmem:[%s191 + $0x30] sm:$0xff] %v1090
        %1099 = vst [vmem:[%s191 + $0x38] sm:$0xff] %v1091
        %s1100 = sand.u32 %s116, 1
        %s1101 = scalar_lea.sflag [#allocation4], %s1100
        %s1102 = sand.u32 %s116, 1
        %s1103 = smul.addr %s1102, 64
        %s1104 = scalar_lea.vmem [#allocation3], %s1103
        // Predicated region
        $region37: #{tpu_custom_call.1} parent=35 // pred_check
          %p1105 = pneg %p126
        $region38: #{tpu_custom_call.1} parent=35 // pred_check_branch
          %1107 = sbr.rel (%p1105) target = $region40
        $region39: #{tpu_custom_call.1} parent=35 // pred_region
          %s1109 = ssub.s32 1024, 1024
          %1110 = vsyncadd %s1101, %s1109
          %s1111 = smul.addr %s19, 8
          %s1112 = smul.addr %s1111, 128
          %s1113 = scalar_lea.hbm %s4, %s1112
          %s1114 = sshll.u32 %s1104, 4
          %s1115 = int_to_ptr.vmem [resolvable:$true] %s1114
          %1120 = dma.vmem_to_hbm [thread:$0]  %s1115, 1024, %s1113, %s1101, 256, 256, 16
        $region40: #{tpu_custom_call.1} parent=35 // pred_fallthru
          _
      $region36: #{tpu_custom_call.1} parent=5 // pred_fallthru
        _
      %p1121 = scmp.le.s32.totalorder 2, %s14
      // Predicated region
      $region41: #{tpu_custom_call.1} parent=5 // pred_check
        %p1122 = pneg %p1121
      $region42: #{tpu_custom_call.1} parent=5 // pred_check_branch
        %1124 = sbr.rel (%p1122) target = $region44
      $region43: #{tpu_custom_call.1} parent=5 // pred_region
        %s1125 = ssub.s32 %s14, 2
        // Predicated region
        $region45: #{tpu_custom_call.1} parent=43 // pred_check
          %p1126 = pneg %p132
        $region46: #{tpu_custom_call.1} parent=43 // pred_check_branch
          %1128 = sbr.rel (%p1126) target = $region48
        $region47: #{tpu_custom_call.1} parent=43 // pred_region
          %s1129 = sand.u32 %s117, 1
          %s1130 = scalar_lea.sflag [#allocation4], %s1129
          %s1131 = sand.u32 %s117, 1
          %s1132 = smul.addr %s1131, 64
          %s1133 = scalar_lea.vmem [#allocation3], %s1132
          %1134 = dma.done %s1130, 1024
        $region48: #{tpu_custom_call.1} parent=43 // pred_fallthru
          _
      $region44: #{tpu_custom_call.1} parent=5 // pred_fallthru
        _
    $region6: #{tpu_custom_call.1} parent=1 // loop_footer
      %s18 = sadd.s32 1, %s14
    $region7: #{tpu_custom_call.1} parent=1 // loop_footer_branch
      %13 = sbr.rel target = $region3
    $region8: #{tpu_custom_call.1} parent=1 // loop_exit
      _
    %1135 = vsyncpa [#allocation4], 1
    %s1136 = scalar_lea.sflag [#allocation4], 1
    %1137 = vsyncpa %s1136, 1

</llo_original>
